<compile_context>
chip_gen: v6e
topology: v6e:2x2x1
jax: 0.10.0
libtpu: 0.0.40
codegen_flags: <defaults>
</compile_context>

<pallas_src>
import jax
import jax.numpy as jnp
from jax.experimental import pallas as pl
from jax.experimental.pallas import tpu as pltpu


def _classify_kernel(x_ref, w_ref, o_ref, acc_ref):
    # x_ref  : (n_blk, c1_tile, H*W)  input tile, producer dtype (f32 or bf16)
    # w_ref  : (c1_tile, C2)          weight chunk (1/(H*W) already folded in)
    # o_ref  : (n_blk, C2)            output tile
    # acc_ref: (n_blk, C2) f32        VMEM accumulator, persists across the k axis
    k = pl.program_id(1)

    @pl.when(k == 0)
    def _():
        acc_ref[...] = jnp.zeros_like(acc_ref)

    # Partial spatial sum over the lane axis (XLU), then the tiny 1x1-conv matmul
    # with f32 accumulation; both ride in slots left idle by the DMA-bound inner loop.
    pooled = jnp.sum(x_ref[...].astype(jnp.float32), axis=-1)          # (n_blk, c1_tile)
    acc_ref[...] += jnp.dot(
        pooled, w_ref[...].astype(jnp.float32), preferred_element_type=jnp.float32
    )

    @pl.when(k == pl.num_programs(1) - 1)
    def _():
        o_ref[...] = acc_ref[...].astype(o_ref.dtype)


def _pick_n_block(n):
    """Split the batch into two 'parallel' blocks when legal (v7x has 2 TensorCores).
    The output block's second-to-last dim must be a multiple of 8 or the full dim."""
    half = n // 2
    if n % 2 == 0 and half % 8 == 0:
        return half
    return n


def _pick_c1_tile(n_blk, c1, hw, itemsize, target_bytes=6 << 20):
    """Largest multiple-of-8 divisor of c1 whose (n_blk, tile, hw) slab fits the
    per-buffer target (~6 MiB -> ~12 MiB double-buffered, fits v5e/v6e/v7x VMEM).
    Falls back to the full C1 (legal as the full-dim case of the (8,128) rule)."""
    divisors = [t for t in range(8, c1 + 1, 8) if c1 % t == 0]
    if not divisors:
        return c1
    fitting = [t for t in divisors if n_blk * t * hw * itemsize <= target_bytes]
    return max(fitting) if fitting else min(divisors)


def classify_forward(x_nchw, weight_oihw):
    """x_nchw: (N, C1, H, W); weight_oihw: (C2, C1, 1, 1) -> (N, C2)."""
    # TODO(synk): PyTorch Classify also accepts a list of feature maps (channel-concat
    # of pooled branches); this wrapper implements the single-tensor path only.
    n, c1, h, w = x_nchw.shape
    c2 = weight_oihw.shape[0]
    hw = h * w

    # Keep the producer's dtype: no wrapper-side astype (that would be a full extra
    # HBM read+write pass before the kernel even starts).
    x_flat = x_nchw.reshape(n, c1, hw)
    in_dtype = x_flat.dtype
    itemsize = jnp.dtype(in_dtype).itemsize

    # 1x1-conv weight (C2, C1, 1, 1) -> (C1, C2); fold the 1/(H*W) pooling scale into
    # it so cross-chunk accumulation of partial sums is exact (no rescaling in-kernel).
    w_mat = (
        weight_oihw.reshape(c2, c1).astype(jnp.float32).T * (1.0 / float(hw))
    ).astype(in_dtype)

    n_blk = _pick_n_block(n)
    c1_tile = _pick_c1_tile(n_blk, c1, hw, itemsize)
    grid = (n // n_blk, c1 // c1_tile)

    # VMEM budget: double-buffered input + weight tiles, resident output tile + f32 acc.
    in_tile_b = n_blk * c1_tile * hw * itemsize
    w_tile_b = c1_tile * c2 * itemsize
    io_b = n_blk * c2 * (itemsize + 4)
    vmem_limit = min(max(2 * (in_tile_b + w_tile_b) + 2 * io_b + (8 << 20), 16 << 20),
                     100 << 20)

    cost = pl.CostEstimate(
        flops=int(2 * n * c1 * c2 + n * c1 * hw),
        transcendentals=0,
        bytes_accessed=int(n * c1 * hw * itemsize + c1 * c2 * itemsize
                           + n * c2 * itemsize),
    )

    out = pl.pallas_call(
        _classify_kernel,
        out_shape=jax.ShapeDtypeStruct((n, c2), in_dtype),
        grid_spec=pltpu.PrefetchScalarGridSpec(
            num_scalar_prefetch=0,
            grid=grid,
            in_specs=[
                pl.BlockSpec((n_blk, c1_tile, hw), lambda ni, k: (ni, k, 0)),
                pl.BlockSpec((c1_tile, c2), lambda ni, k: (k, 0)),
            ],
            out_specs=pl.BlockSpec((n_blk, c2), lambda ni, k: (ni, 0)),
            scratch_shapes=[pltpu.VMEM((n_blk, c2), jnp.float32)],
        ),
        compiler_params=pltpu.CompilerParams(
            dimension_semantics=("parallel", "arbitrary"),
            vmem_limit_bytes=int(vmem_limit),
        ),
        cost_estimate=cost,
    )(x_flat, w_mat)
    return out


if __name__ == "__main__":
    key = jax.random.PRNGKey(0)
    kx, kw = jax.random.split(key)

    # Small shapes consistent with the module: batch=2, c1=4, spatial=16x16, c2=8.
    N, C1, H, W, C2 = 2, 4, 16, 16, 8
    x = jax.random.normal(kx, (N, C1, H, W), dtype=jnp.float32)
    # Deterministic synthetic conv weight, PyTorch layout (C2, C1, 1, 1), no bias.
    weight = jax.random.normal(kw, (C2, C1, 1, 1), dtype=jnp.float32) * 0.1

    out = classify_forward(x, weight)
    out = jax.block_until_ready(out)

    # Pure-JAX reference: global average pool then 1x1 conv (matmul), then flatten.
    ref = jnp.mean(x, axis=(2, 3)) @ weight.reshape(C2, C1).T
    assert out.shape == (N, C2)
    assert jnp.allclose(out, ref, atol=1e-4, rtol=1e-4), float(jnp.max(jnp.abs(out - ref)))

    print("KERNEL_OK")
</pallas_src>

<mosaic_0001>
module attributes {stable_mosaic.version = 11 : i64} {
  func.func @_classify_kernel(%arg0: i32, %arg1: i32, %arg2: memref<2x4x256xf32, #tpu.memory_space<vmem>>, %arg3: memref<4x8xf32, #tpu.memory_space<vmem>>, %arg4: memref<2x8xf32, #tpu.memory_space<vmem>>, %arg5: memref<2x8xf32, #tpu.memory_space<vmem>>) attributes {dimension_semantics = [#tpu.dimension_semantics<parallel>, #tpu.dimension_semantics<arbitrary>], iteration_bounds = array<i64: 1, 1>, scalar_prefetch = 0 : i64, scratch_operands = 1 : i64, tpu.core_type = #tpu.core_type<tc>, window_params = [{transform_indices = @transform_0, window_bounds = array<i64: 2, 4, 256>}, {transform_indices = @transform_1, window_bounds = array<i64: 4, 8>}, {transform_indices = @transform_2, window_bounds = array<i64: 2, 8>}]} {
    %c0_i32 = arith.constant 0 : i32
    %0 = arith.cmpi eq, %arg1, %c0_i32 : i32
    %1 = arith.extui %0 : i1 to i32
    %c0_i32_0 = arith.constant 0 : i32
    %2 = arith.cmpi ne, %1, %c0_i32_0 : i32
    scf.if %2 {
      %cst_12 = arith.constant 0.000000e+00 : f32
      %13 = vector.broadcast %cst_12 : f32 to vector<2x8xf32>
      %c0_13 = arith.constant 0 : index
      %c0_14 = arith.constant 0 : index
      %14 = vector.load %arg5[%c0_13, %c0_14] : memref<2x8xf32, #tpu.memory_space<vmem>>, vector<2x8xf32>
      tpu.vector_store %arg5[%c0_13, %c0_14], %13 {strides = array<i32>} : memref<2x8xf32, #tpu.memory_space<vmem>>, vector<2x8xf32>,
    } else {
    }
    %c0 = arith.constant 0 : index
    %c0_1 = arith.constant 0 : index
    %c0_2 = arith.constant 0 : index
    %3 = vector.load %arg2[%c0, %c0_1, %c0_2] : memref<2x4x256xf32, #tpu.memory_space<vmem>>, vector<2x4x256xf32>
    %cst = arith.constant dense<0.000000e+00> : vector<2x4xf32>
    %4 = vector.multi_reduction <add>, %3, %cst [2] : vector<2x4x256xf32> to vector<2x4xf32>
    %c0_3 = arith.constant 0 : index
    %c0_4 = arith.constant 0 : index
    %5 = vector.load %arg5[%c0_3, %c0_4] : memref<2x8xf32, #tpu.memory_space<vmem>>, vector<2x8xf32>
    %c0_5 = arith.constant 0 : index
    %c0_6 = arith.constant 0 : index
    %6 = vector.load %arg3[%c0_5, %c0_6] : memref<4x8xf32, #tpu.memory_space<vmem>>, vector<4x8xf32>
    %cst_7 = arith.constant dense<0.000000e+00> : vector<2x8xf32>
    %7 = tpu.matmul %4, %6, %cst_7 {dimension_numbers = #tpu.dot_dimension_numbers<[1], [0], [0], [1], [0, 0, 1, 1], [], []>} : vector<2x4xf32>, vector<4x8xf32>, vector<2x8xf32> -> vector<2x8xf32>
    %8 = arith.addf %5, %7 : vector<2x8xf32>
    %c0_8 = arith.constant 0 : index
    %c0_9 = arith.constant 0 : index
    %9 = vector.load %arg5[%c0_8, %c0_9] : memref<2x8xf32, #tpu.memory_space<vmem>>, vector<2x8xf32>
    tpu.vector_store %arg5[%c0_8, %c0_9], %8 {strides = array<i32>} : memref<2x8xf32, #tpu.memory_space<vmem>>, vector<2x8xf32>,
    %c0_i32_10 = arith.constant 0 : i32
    %10 = arith.cmpi eq, %arg1, %c0_i32_10 : i32
    %11 = arith.extui %10 : i1 to i32
    %c0_i32_11 = arith.constant 0 : i32
    %12 = arith.cmpi ne, %11, %c0_i32_11 : i32
    scf.if %12 {
      %c0_12 = arith.constant 0 : index
      %c0_13 = arith.constant 0 : index
      %13 = vector.load %arg5[%c0_12, %c0_13] : memref<2x8xf32, #tpu.memory_space<vmem>>, vector<2x8xf32>
      %c0_14 = arith.constant 0 : index
      %c0_15 = arith.constant 0 : index
      %14 = vector.load %arg4[%c0_14, %c0_15] : memref<2x8xf32, #tpu.memory_space<vmem>>, vector<2x8xf32>
      tpu.vector_store %arg4[%c0_14, %c0_15], %13 {strides = array<i32>} : memref<2x8xf32, #tpu.memory_space<vmem>>, vector<2x8xf32>,
    } else {
    }
    return
  }
  func.func @transform_0(%arg0: i32, %arg1: i32) -> (i32, i32, i32) {
    %c0_i32 = arith.constant 0 : i32
    %c0_i32_0 = arith.constant 0 : i32
    return %arg0, %arg1, %c0_i32 : i32, i32, i32
  }
  func.func @transform_1(%arg0: i32, %arg1: i32) -> (i32, i32) {
    %c0_i32 = arith.constant 0 : i32
    %c0_i32_0 = arith.constant 0 : i32
    return %arg1, %c0_i32 : i32, i32
  }
  func.func @transform_2(%arg0: i32, %arg1: i32) -> (i32, i32) {
    %c0_i32 = arith.constant 0 : i32
    %c0_i32_0 = arith.constant 0 : i32
    return %arg0, %c0_i32 : i32, i32
  }
}

</mosaic_0001>

<llo_original>
// kernel: tpu_custom_call.1
$region0: #{tpu_custom_call.1}
  #allocation0 [shape = 'u32[]', space=smem, size = 0x4, offset = 0x4, fixed_abs, tag = 'smem constant byte address 0x4 - core index']
  #allocation1 [shape = 'u32[144,128]{1,0:T(1,128)}', space=vmem, size = 0x12000, scoped, tag = 'internal scratch']
  #allocation2 [shape = 'f32[2,8]{1,0:T(2,128)}', space=vmem, size = 0x400, scoped, tag = 'scratch operand']
  %s0 = inlined_call_operand.hbm [shape: f32[2,4,256], index: 0, kind: input, shape index: {}]
  %s1 = inlined_call_operand.hbm [shape: f32[4,8], index: 1, kind: input, shape index: {}]
  %s2 = inlined_call_operand.hbm [shape: f32[2,8], index: 2, kind: output, shape index: {}]
  %s3 = sld [smem:[#allocation0]]
  $region34: #{tpu_custom_call.1} parent=0
    _
  %s5 = ssub.s32 1, %s3
  %s6 = scalar_select 0, %s5, %s3
  $region1: #{tpu_custom_call.1} parent=0
    #allocation3 [shape = 'u8[8192]{0}', space=vmem, size = 0x2000, scoped, tag = 'input window, operand 0, single buffered']
    #allocation4 [shape = 's32[1]{0}', space=sflag, size = 0x4, scoped, tag = 'scoped memory for tpu_custom_call.1']
    #allocation5 [shape = 's32[1]{0}', space=sflag, size = 0x4, scoped, tag = 'scoped memory for tpu_custom_call.1']
    #allocation6 [shape = 'u8[2048]{0}', space=vmem, size = 0x800, scoped, tag = 'input window, operand 1, single buffered']
    #allocation7 [shape = 's32[1]{0}', space=sflag, size = 0x4, scoped, tag = 'scoped memory for tpu_custom_call.1']
    #allocation8 [shape = 'u8[1024]{0}', space=vmem, size = 0x400, scoped, tag = 'output window, operand 0, single buffered']
    %7 = vsyncpa [#allocation4], 0
    %8 = vsyncpa [#allocation7], 0
    %9 = vsyncpa [#allocation5], 0
    // Predicated region
    $region2: #{tpu_custom_call.1} parent=1 // pred_check
      _
    $region3: #{tpu_custom_call.1} parent=1 // pred_check_branch
      %11 = sbr.rel (0) target = $region5
    $region4: #{tpu_custom_call.1} parent=1 // pred_region
      %s13 = ssub.s32 256, 256
      %14 = vsyncadd [#allocation4], %s13
      %s15 = sshll.u32 [#allocation3], 4
      %s16 = int_to_ptr.vmem [resolvable:$true] %s15
      %21 = dma.hbm_to_vmem [thread:$0]  %s0, 256, %s16, [#allocation4], 128, 128, 8
    $region5: #{tpu_custom_call.1} parent=1 // pred_fallthru
      _
    // Predicated region
    $region6: #{tpu_custom_call.1} parent=1 // pred_check
      _
    $region7: #{tpu_custom_call.1} parent=1 // pred_check_branch
      %23 = sbr.rel (0) target = $region9
    $region8: #{tpu_custom_call.1} parent=1 // pred_region
      %s25 = ssub.s32 64, 64
      %26 = vsyncadd [#allocation7], %s25
      %s28 = sshll.u32 [#allocation6], 4
      %s29 = int_to_ptr.vmem [resolvable:$true] %s28
      %31 = dma.hbm_to_vmem [thread:$0]  %s1, 64, %s29, [#allocation7]
    $region9: #{tpu_custom_call.1} parent=1 // pred_fallthru
      _
    // Predicated region
    $region10: #{tpu_custom_call.1} parent=1 // pred_check
      _
    $region11: #{tpu_custom_call.1} parent=1 // pred_check_branch
      %33 = sbr.rel (0) target = $region13
    $region12: #{tpu_custom_call.1} parent=1 // pred_region
      %34 = dma.done [#allocation4], 256
    $region13: #{tpu_custom_call.1} parent=1 // pred_fallthru
      _
    // Predicated region
    $region14: #{tpu_custom_call.1} parent=1 // pred_check
      _
    $region15: #{tpu_custom_call.1} parent=1 // pred_check_branch
      %36 = sbr.rel (0) target = $region17
    $region16: #{tpu_custom_call.1} parent=1 // pred_region
      %37 = dma.done [#allocation7], 64
    $region17: #{tpu_custom_call.1} parent=1 // pred_fallthru
      _
    %p38 = scmp.eq.s32.totalorder 0, 0
    // Predicated region
    $region18: #{tpu_custom_call.1} parent=1 // pred_check
      %p39 = pneg %p38
    $region19: #{tpu_custom_call.1} parent=1 // pred_check_branch
      %41 = sbr.rel (%p39) target = $region21
    $region20: #{tpu_custom_call.1} parent=1 // pred_region
      %vm42 = vcmask 58368
      %43 = vst.msk [vmem:[#allocation2] sm:$0x3] %vm42, 0.0
    $region21: #{tpu_custom_call.1} parent=1 // pred_fallthru
      _
    %v44 = vld [vmem:[#allocation3] sm:$0xff]
    %v45 = vld [vmem:[#allocation3 + $0x8] sm:$0xff]
    %v48 = vcombine.high %v44, %v44
    %v49 = vcombine.high %v45, %v45
    %vm52 = vcmask 1043456
    %v53 = vsel %vm52, %v44, 0.0
    %v54 = vsel %vm52, %v48, 0.0
    %v55 = vadd.f32 %v53, %v54
    %56 = vadd.xlane.f32.xlu0 %v55
    %v57 = vpop.xlane.xlu0 %56
    %v58 = vsel %vm52, %v45, 0.0
    %v59 = vsel %vm52, %v49, 0.0
    %v60 = vadd.f32 %v58, %v59
    %61 = vadd.xlane.f32.xlu0 %v60
    %v62 = vpop.xlane.xlu0 %61
    %v63 = vld [vmem:[#allocation2] sm:$0x3]
    %v64 = vld [vmem:[#allocation6] sm:$0xf]
    %v67 = vlaneseq
    %v68 = vand.u32 %v67, 127
    %v69 = vlaneseq
    %v70 = vshrl.u32 %v69, 7
    %v71 = vsub.s32 %v68, %v70
    %v72 = vrot.slane %v57, %v71
    %v73 = vlaneseq
    %v74 = vshrl.u32 %v73, 7
    %v75 = vsub.s32 %v68, %v74
    %v76 = vrot.slane %v62, %v75
    %vm77 = vcmask 1041409
    %v78 = vsel %vm77, %v76, %v72
    %vm79 = vcmask 31744
    %v80 = vsel %vm79, %v78, 0
    %v83 = vsel %vm52, %v64, 0
    %85 = vmatprep.subr.mxu0 0.0
    %86 = vmatpush1.msra.mxu0 0.0
    %87 = vmatprep.subr.mxu0 0.0
    %88 = vmatpush1.msra.mxu0 0.0
    %89 = vmatprep.subr.mxu0 0.0
    %90 = vmatpush1.msra.mxu0 0.0
    %91 = vmatprep.subr.mxu0 0.0
    %92 = vmatpush1.msra.mxu0 0.0
    %93 = vmatprep.subr.mxu0 0.0
    %94 = vmatpush1.msra.mxu0 0.0
    %95 = vmatprep.subr.mxu0 0.0
    %96 = vmatpush1.msra.mxu0 0.0
    %97 = vmatprep.subr.mxu0 0.0
    %98 = vmatpush1.msra.mxu0 0.0
    %99 = vmatprep.subr.mxu0 0.0
    %100 = vmatpush1.msra.mxu0 0.0
    %101 = vmatprep.subr.mxu0 0.0
    %102 = vmatpush1.msra.mxu0 0.0
    %103 = vmatprep.subr.mxu0 0.0
    %104 = vmatpush1.msra.mxu0 0.0
    %105 = vmatprep.subr.mxu0 0.0
    %106 = vmatpush1.msra.mxu0 0.0
    %107 = vmatprep.subr.mxu0 0.0
    %108 = vmatpush1.msra.mxu0 0.0
    %109 = vmatprep.subr.mxu0 0.0
    %110 = vmatpush1.msra.mxu0 0.0
    %111 = vmatprep.subr.mxu0 0.0
    %112 = vmatpush1.msra.mxu0 0.0
    %113 = vmatprep.subr.mxu0 0.0
    %114 = vmatpush1.msra.mxu0 0.0
    %115 = vmatprep.subr.mxu0 0.0
    %116 = vmatpush1.msra.mxu0 %v83
    %117 = vmatprep.subr.mxu0 0.0
    %118 = vmatpush2.msra.mxu0 0.0
    %119 = vmatprep.subr.mxu0 0.0
    %120 = vmatpush2.msra.mxu0 0.0
    %121 = vmatprep.subr.mxu0 0.0
    %122 = vmatpush2.msra.mxu0 0.0
    %123 = vmatprep.subr.mxu0 0.0
    %124 = vmatpush2.msra.mxu0 0.0
    %125 = vmatprep.subr.mxu0 0.0
    %126 = vmatpush2.msra.mxu0 0.0
    %127 = vmatprep.subr.mxu0 0.0
    %128 = vmatpush2.msra.mxu0 0.0
    %129 = vmatprep.subr.mxu0 0.0
    %130 = vmatpush2.msra.mxu0 0.0
    %131 = vmatprep.subr.mxu0 0.0
    %132 = vmatpush2.msra.mxu0 0.0
    %133 = vmatprep.subr.mxu0 0.0
    %134 = vmatpush2.msra.mxu0 0.0
    %135 = vmatprep.subr.mxu0 0.0
    %136 = vmatpush2.msra.mxu0 0.0
    %137 = vmatprep.subr.mxu0 0.0
    %138 = vmatpush2.msra.mxu0 0.0
    %139 = vmatprep.subr.mxu0 0.0
    %140 = vmatpush2.msra.mxu0 0.0
    %141 = vmatprep.subr.mxu0 0.0
    %142 = vmatpush2.msra.mxu0 0.0
    %143 = vmatprep.subr.mxu0 0.0
    %144 = vmatpush2.msra.mxu0 0.0
    %145 = vmatprep.subr.mxu0 0.0
    %146 = vmatpush2.msra.mxu0 0.0
    %147 = vmatprep.subr.mxu0 0.0
    %148 = vmatpush2.msra.mxu0 0.0
    %149 = vmatprep.mubr.f32.mxu0 0.0
    %150 = vmatmul.mubr.f32.gmra.mxu0 %v80
    %v151 = vpop.f32.mrf.mxu0
    %v152 = vadd.f32 0.0, %v151
    %v153 = vpop.f32.mrf.mxu0
    %154 = vdwg.mxu0
    %v155 = vadd.f32 %v63, %v152
    %vm156 = vcmask 58368
    %157 = vst.msk [vmem:[#allocation2] sm:$0x3] %vm156, %v155
    // Predicated region
    $region22: #{tpu_custom_call.1} parent=1 // pred_check
      %p158 = pneg %p38
    $region23: #{tpu_custom_call.1} parent=1 // pred_check_branch
      %160 = sbr.rel (%p158) target = $region25
    $region24: #{tpu_custom_call.1} parent=1 // pred_region
      %v161 = vld [vmem:[#allocation2] sm:$0x3]
      %162 = vst.msk [vmem:[#allocation8] sm:$0x3] %vm156, %v161
    $region25: #{tpu_custom_call.1} parent=1 // pred_fallthru
      _
    // Predicated region
    $region26: #{tpu_custom_call.1} parent=1 // pred_check
      _
    $region27: #{tpu_custom_call.1} parent=1 // pred_check_branch
      %164 = sbr.rel (0) target = $region29
    $region28: #{tpu_custom_call.1} parent=1 // pred_region
      %s166 = ssub.s32 32, 32
      %167 = vsyncadd [#allocation5], %s166
      %s169 = sshll.u32 [#allocation8], 4
      %s170 = int_to_ptr.vmem [resolvable:$true] %s169
      %172 = dma.vmem_to_hbm [thread:$0]  %s170, 32, %s2, [#allocation5]
    $region29: #{tpu_custom_call.1} parent=1 // pred_fallthru
      _
    // Predicated region
    $region30: #{tpu_custom_call.1} parent=1 // pred_check
      _
    $region31: #{tpu_custom_call.1} parent=1 // pred_check_branch
      %174 = sbr.rel (0) target = $region33
    $region32: #{tpu_custom_call.1} parent=1 // pred_region
      %175 = dma.done [#allocation5], 32
    $region33: #{tpu_custom_call.1} parent=1 // pred_fallthru
      _
    %176 = vsyncpa [#allocation4], 1
    %177 = vsyncpa [#allocation7], 1
    %178 = vsyncpa [#allocation5], 1

</llo_original>
